<compile_context>
chip_gen: v7x
topology: tpu7x:2x2x1
jax: 0.10.0
libtpu: 0.0.40
codegen_flags: <defaults>
</compile_context>

<pallas_src>
import functools

import numpy as np
import jax
import jax.numpy as jnp
from jax import lax
from jax.experimental import pallas as pl
from jax.experimental.pallas import tpu as pltpu


# ---------------------------------------------------------------------------
# Generation-aware VMEM budget
# ---------------------------------------------------------------------------

def _vmem_limit_bytes():
    """v5e/v6e have 128 MiB VMEM, v7x has 64 MiB; leave headroom for the
    compiler's internal scratch."""
    try:
        cap = int(pltpu.get_tpu_info().vmem_capacity_bytes)
    except Exception:
        cap = 64 * 1024 * 1024
    return min(cap * 3 // 4, 112 * 1024 * 1024)


_VMEM_LIMIT = _vmem_limit_bytes()
_BAND_BUDGET = max(8 * 1024 * 1024, int(_VMEM_LIMIT * 0.7))
_DEFAULT_MAX_BAND_ROWS = 256


def _compiler_params(semantics):
    return pltpu.CompilerParams(dimension_semantics=semantics,
                                vmem_limit_bytes=_VMEM_LIMIT)


def _pick_cols(cout):
    if cout <= 256:
        return cout
    for t in (256, 128):            # 256 matches the v6e/v7x MXU width
        if cout % t == 0:
            return t
    return cout


def _pick_band_rows(ho, halo, wq, wo, cin, tn, taps, in_bytes, out_bytes,
                    budget, max_rows):
    """Largest output-row band (a divisor of ho, <= max_rows) whose per-step
    footprint (double-buffered x/out/w blocks + f32 accumulator + the in-kernel
    shifted copy) fits the VMEM budget."""
    for bo in range(min(ho, max_rows), 0, -1):
        if ho % bo:
            continue
        bh_in = bo + halo
        est = (2 * bh_in * wq * cin * in_bytes      # x band, double buffered
               + bh_in * wo * cin * in_bytes        # in-kernel W-shifted copy
               + bo * wo * tn * 4                   # f32 accumulator
               + 2 * bo * wo * tn * out_bytes       # output block, double buffered
               + 2 * taps * cin * tn * in_bytes)    # weight tile, double buffered
        if est <= budget:
            return bo
    return 1


def _make_bands(x, bo, halo):
    """(B, nb*bo + halo, W, C) -> (B*nb, bo + halo, W, C) overlapping row bands.
    XLA fuses this with the producing affine/pad/space-to-depth expression, so
    the halo duplication only costs ~halo/bo extra HBM."""
    b, hin, w, c = x.shape
    nb = (hin - halo) // bo
    if nb == 1:
        return x
    bands = [x[:, i * bo:i * bo + bo + halo] for i in range(nb)]
    return jnp.stack(bands, axis=1).reshape(b * nb, bo + halo, w, c)


# ---------------------------------------------------------------------------
# Kernel 1: band-tiled stride-1 tap conv (kh*kw shifted-window GEMMs on the
#           MXU) with fused bias, optional BN-stats epilogue and optional tanh.
#           Serves: s2d downsampling convs (2x2 taps), polyphase ConvTranspose
#           (2x2 taps, 4*cout phase channels), 7x7 head, and (with 1x1 taps)
#           the stem im2col GEMM.
# ---------------------------------------------------------------------------

def _tap_conv_kernel(x_ref, w_ref, b_ref, *out_refs, kh, kw, bo, wo, out_act,
                     emit_stats):
    if emit_stats:
        o_ref, sum_ref, sq_ref = out_refs
    else:
        (o_ref,) = out_refs
    x = x_ref[...]                                       # (bo+kh-1, wq, cin)
    cin = x.shape[-1]
    tn = o_ref.shape[-1]
    acc = jnp.zeros((bo * wo, tn), jnp.float32)
    for c in range(kw):                                  # static tap loops
        xc = x[:, c:c + wo, :]                           # one W-shift copy per kw
        for r in range(kh):
            win = xc[r:r + bo].reshape(bo * wo, cin)     # cheap outer-dim slice
            acc = acc + jnp.dot(win, w_ref[r * kw + c],
                                preferred_element_type=jnp.float32)
    acc = acc + b_ref[...]                               # conv bias (1, tn)
    if emit_stats:                                       # BN stats for next layer
        sum_ref[...] = jnp.sum(acc, axis=0, keepdims=True)
        sq_ref[...] = jnp.sum(acc * acc, axis=0, keepdims=True)
    if out_act == "tanh":
        acc = jnp.tanh(acc)
    o_ref[...] = acc.astype(o_ref.dtype)


def _tap_conv_call(bands, w_pk, bias, *, kh, kw, bo, wo, out_act, emit_stats,
                   out_dtype):
    nb_tot, bh_in, wq, cin = bands.shape
    taps, _, cout = w_pk.shape
    tn = _pick_cols(cout)
    grid = (nb_tot, cout // tn)

    out_shapes = [jax.ShapeDtypeStruct((nb_tot, bo * wo, cout), out_dtype)]
    out_specs = [pl.BlockSpec((None, bo * wo, tn), lambda i, j: (i, 0, j))]
    if emit_stats:
        out_shapes += [jax.ShapeDtypeStruct((nb_tot, 1, cout), jnp.float32)] * 2
        out_specs += [pl.BlockSpec((None, 1, tn), lambda i, j: (i, 0, j))] * 2
        out_shape_arg, out_spec_arg = tuple(out_shapes), out_specs
    else:
        out_shape_arg, out_spec_arg = out_shapes[0], out_specs[0]

    res = pl.pallas_call(
        functools.partial(_tap_conv_kernel, kh=kh, kw=kw, bo=bo, wo=wo,
                          out_act=out_act, emit_stats=emit_stats),
        out_shape=out_shape_arg,
        grid_spec=pltpu.PrefetchScalarGridSpec(
            num_scalar_prefetch=0,
            grid=grid,
            in_specs=[pl.BlockSpec((None, bh_in, wq, cin),
                                   lambda i, j: (i, 0, 0, 0)),
                      pl.BlockSpec((taps, cin, tn), lambda i, j: (0, 0, j)),
                      pl.BlockSpec((1, tn), lambda i, j: (0, j))],
            out_specs=out_spec_arg),
        compiler_params=_compiler_params(("parallel", "parallel")),
    )(bands, w_pk, bias)

    if emit_stats:
        out, ssum, ssq = res
        return out, jnp.sum(ssum, axis=(0, 1)), jnp.sum(ssq, axis=(0, 1))
    return res


def conv_layer(xp, w_pk, bias, *, kh, kw, out_act=None, emit_stats=True,
               out_dtype=jnp.bfloat16, max_band_rows=_DEFAULT_MAX_BAND_ROWS):
    """Stride-1 tap conv of an already transformed/padded NHWC input."""
    bsz, hin, wq, cin = xp.shape
    taps, _, cout = w_pk.shape
    assert taps == kh * kw
    halo = kh - 1
    ho, wo = hin - halo, wq - (kw - 1)
    tn = _pick_cols(cout)
    in_bytes = jnp.dtype(xp.dtype).itemsize
    out_bytes = jnp.dtype(out_dtype).itemsize
    bo = _pick_band_rows(ho, halo, wq, wo, cin, tn, taps, in_bytes, out_bytes,
                         _BAND_BUDGET, max_band_rows)
    # v7x megacore: make sure the grid has >= 2 parallel steps when possible.
    if bsz * (ho // bo) * (cout // tn) < 2:
        for cand in range(bo - 1, 0, -1):
            if ho % cand == 0:
                bo = cand
                break
    nb = ho // bo
    bands = _make_bands(xp, bo, halo)
    res = _tap_conv_call(bands, w_pk, bias, kh=kh, kw=kw, bo=bo, wo=wo,
                         out_act=out_act, emit_stats=emit_stats,
                         out_dtype=out_dtype)
    if emit_stats:
        out_b, ssum, ssq = res
    else:
        out_b = res
    out4d = out_b.reshape(bsz, nb, bo, wo, cout).reshape(bsz, ho, wo, cout)
    if emit_stats:
        return out4d, ssum, ssq
    return out4d


# ---------------------------------------------------------------------------
# Kernel 2 & 3: instance-wise average pooling (segment mean), HW-tiled.
# ---------------------------------------------------------------------------

def _seg_sum_kernel(ids_ref, inst_ref, x_ref, sum_ref, cnt_ref):
    @pl.when(pl.program_id(1) == 0)
    def _():
        sum_ref[...] = jnp.zeros_like(sum_ref)
        cnt_ref[...] = jnp.zeros_like(cnt_ref)
    oht = (ids_ref[...] == inst_ref[...]).astype(jnp.float32)     # (K, T)
    sum_ref[...] += jnp.dot(oht, x_ref[...],
                            preferred_element_type=jnp.float32)   # (K, C)
    cnt_ref[...] += jnp.sum(oht, axis=1, keepdims=True)           # (K, 1)


def _seg_gather_kernel(ids_ref, inst_ref, means_ref, o_ref):
    oht = (ids_ref[...] == inst_ref[...]).astype(jnp.float32)     # (K, T)
    o_ref[...] = lax.dot_general(oht, means_ref[...],
                                 (((0,), (0,)), ((), ())),
                                 preferred_element_type=jnp.float32)


def instance_pool(x, inst_row, ids_col):
    """x: (B, HW, C) f32; inst_row: (B, 1, HW) int32; ids_col: (K, 1) int32."""
    bsz, hw, c = x.shape
    kpad = ids_col.shape[0]
    t_hw = hw
    for cand in (4096, 2048, 1024, 512, 256, 128):   # lane-aligned HW tiles
        if hw > cand and hw % cand == 0:
            t_hw = cand
            break
    nt = hw // t_hw

    sums, cnts = pl.pallas_call(
        _seg_sum_kernel,
        out_shape=(jax.ShapeDtypeStruct((bsz, kpad, c), jnp.float32),
                   jax.ShapeDtypeStruct((bsz, kpad, 1), jnp.float32)),
        grid_spec=pltpu.PrefetchScalarGridSpec(
            num_scalar_prefetch=0, grid=(bsz, nt),
            in_specs=[pl.BlockSpec((kpad, 1), lambda b, t: (0, 0)),
                      pl.BlockSpec((None, 1, t_hw), lambda b, t: (b, 0, t)),
                      pl.BlockSpec((None, t_hw, c), lambda b, t: (b, t, 0))],
            out_specs=[pl.BlockSpec((None, kpad, c), lambda b, t: (b, 0, 0)),
                       pl.BlockSpec((None, kpad, 1), lambda b, t: (b, 0, 0))]),
        compiler_params=_compiler_params(("parallel", "arbitrary")),
    )(ids_col, inst_row, x)

    means = sums / jnp.maximum(cnts, 1.0)            # (B, K, C)

    return pl.pallas_call(
        _seg_gather_kernel,
        out_shape=jax.ShapeDtypeStruct((bsz, hw, c), jnp.float32),
        grid_spec=pltpu.PrefetchScalarGridSpec(
            num_scalar_prefetch=0, grid=(bsz, nt),
            in_specs=[pl.BlockSpec((kpad, 1), lambda b, t: (0, 0)),
                      pl.BlockSpec((None, 1, t_hw), lambda b, t: (b, 0, t)),
                      pl.BlockSpec((None, kpad, c), lambda b, t: (b, 0, 0))],
            out_specs=pl.BlockSpec((None, t_hw, c), lambda b, t: (b, t, 0))),
        compiler_params=_compiler_params(("parallel", "parallel")),
    )(ids_col, inst_row, means)


# ---------------------------------------------------------------------------
# BatchNorm (training-mode batch stats) -> per-channel affine
# ---------------------------------------------------------------------------

def bn_scale_shift(ssum, ssq, count, gamma, beta, eps=1e-5):
    mean = ssum / count
    var = jnp.maximum(ssq / count - mean * mean, 0.0)
    scale = gamma / jnp.sqrt(var + eps)
    shift = beta - mean * scale
    return scale, shift


# ---------------------------------------------------------------------------
# Parameter construction / packing (synthetic params, packed once at init).
# ---------------------------------------------------------------------------

def init_encoder_params(key, input_nc, output_nc, ngf, n_downsampling,
                        dtype=jnp.bfloat16):
    params = {}
    keys = iter(jax.random.split(key, 2 * (2 * n_downsampling + 2)))

    def uni(k, shape, fan_in):
        std = 1.0 / np.sqrt(fan_in)
        return jax.random.uniform(k, shape, jnp.float32, -std, std)

    # ---- stem: Conv2d(input_nc, ngf, 7) -> im2col GEMM weight (1, 49*cin, ngf)
    w = uni(next(keys), (ngf, input_nc, 7, 7), input_nc * 49)
    b = uni(next(keys), (ngf,), input_nc * 49)
    w_stem = jnp.transpose(w, (2, 3, 1, 0)).reshape(1, 49 * input_nc, ngf)
    params['stem'] = dict(w=w_stem.astype(dtype), b=b.reshape(1, ngf),
                          gamma=jnp.ones((ngf,), jnp.float32),
                          beta=jnp.zeros((ngf,), jnp.float32))

    # ---- downsampling: Conv2d(cin, 2cin, 3, s=2, p=1) as a space-to-depth
    #      2x2-tap conv: (4 taps, 4*cin, cout), channel order (dy, dx, cin).
    for i in range(n_downsampling):
        mult = 2 ** i
        cin, cout = ngf * mult, ngf * mult * 2
        w = np.asarray(uni(next(keys), (cout, cin, 3, 3), cin * 9))   # OIHW
        b = uni(next(keys), (cout,), cin * 9)
        w_np = np.zeros((4, 4 * cin, cout), np.float32)
        for a in (0, 1):
            for bcol in (0, 1):
                for dy in (0, 1):
                    for dx in (0, 1):
                        r = dy if a == 0 else (2 if dy == 0 else None)
                        c = dx if bcol == 0 else (2 if dx == 0 else None)
                        if r is None or c is None:
                            continue
                        ch0 = (dy * 2 + dx) * cin
                        w_np[a * 2 + bcol, ch0:ch0 + cin, :] = w[:, :, r, c].T
        params[f'down{i}'] = dict(w=jnp.asarray(w_np, dtype),
                                  b=b.reshape(1, cout),
                                  gamma=jnp.ones((cout,), jnp.float32),
                                  beta=jnp.zeros((cout,), jnp.float32))

    # ---- upsampling: ConvTranspose2d(cin, cout, 3, s=2, p=1, op=1) as a
    #      polyphase 2x2-tap conv producing 4*cout phase channels (dy, dx, co).
    kr_map = {(0, 0): 1, (1, 0): 2, (1, 1): 0}       # (phase, tap) -> torch k-index
    for i in range(n_downsampling):
        mult = 2 ** (n_downsampling - i)
        cin, cout = ngf * mult, (ngf * mult) // 2
        wt = np.asarray(uni(next(keys), (cin, cout, 3, 3), cin * 9))  # torch IOHW
        b = uni(next(keys), (cout,), cin * 9)
        w_np = np.zeros((4, cin, 4 * cout), np.float32)
        for a in (0, 1):
            for bcol in (0, 1):
                for dy in (0, 1):
                    for dx in (0, 1):
                        kr = kr_map.get((dy, a))
                        kc = kr_map.get((dx, bcol))
                        if kr is None or kc is None:
                            continue
                        ch0 = (dy * 2 + dx) * cout
                        w_np[a * 2 + bcol, :, ch0:ch0 + cout] = wt[:, :, kr, kc]
        b4 = jnp.tile(b.reshape(1, 1, cout), (1, 4, 1)).reshape(1, 4 * cout)
        params[f'up{i}'] = dict(w=jnp.asarray(w_np, dtype), b=b4,
                                gamma=jnp.ones((cout,), jnp.float32),
                                beta=jnp.zeros((cout,), jnp.float32))

    # ---- head: Conv2d(ngf, output_nc, 7); output channels padded to a
    #      lane-dense 128 (zero weights/bias), sliced back in the wrapper.
    cout_p = max(128, ((output_nc + 127) // 128) * 128)
    w = uni(next(keys), (output_nc, ngf, 7, 7), ngf * 49)
    b = uni(next(keys), (output_nc,), ngf * 49)
    w_t = jnp.transpose(w, (2, 3, 1, 0)).reshape(49, ngf, output_nc)
    w_t = jnp.pad(w_t, ((0, 0), (0, 0), (0, cout_p - output_nc)))
    b_p = jnp.pad(b, (0, cout_p - output_nc)).reshape(1, cout_p)
    params['head'] = dict(w=w_t.astype(dtype), b=b_p)
    return params


# ---------------------------------------------------------------------------
# Forward pass
# ---------------------------------------------------------------------------

def encoder_forward(params, x_nchw, inst_nchw, n_downsampling, output_nc,
                    max_band_rows=_DEFAULT_MAX_BAND_ROWS,
                    compute_dtype=jnp.bfloat16):
    f32 = jnp.float32
    x = jnp.transpose(x_nchw, (0, 2, 3, 1)).astype(f32)        # NCHW -> NHWC
    bsz, h, w, c = x.shape
    assert h % (2 ** n_downsampling) == 0 and w % (2 ** n_downsampling) == 0

    # ---- stem: ReflectionPad2d(3) + Conv2d(k=7) via im2col GEMM (K=49*cin).
    p = params['stem']
    xp = jnp.pad(x, ((0, 0), (3, 3), (3, 3), (0, 0)), mode='reflect')
    patches = jnp.concatenate([xp[:, r:r + h, cc:cc + w, :]
                               for r in range(7) for cc in range(7)], axis=-1)
    cur, ssum, ssq = conv_layer(patches.astype(compute_dtype), p['w'], p['b'],
                                kh=1, kw=1, emit_stats=True,
                                out_dtype=compute_dtype,
                                max_band_rows=max_band_rows)
    c = cur.shape[-1]
    scale, shift = bn_scale_shift(ssum, ssq, bsz * h * w, p['gamma'], p['beta'])

    # ---- downsampling: BN+ReLU + zero-pad + space-to-depth fused into one XLA
    #      rearrangement, then a 2x2-tap direct conv on the 4*cin channels.
    for i in range(n_downsampling):
        p = params[f'down{i}']
        a = jnp.maximum(cur.astype(f32) * scale + shift, 0.0).astype(compute_dtype)
        ap = jnp.pad(a, ((0, 0), (1, 1), (1, 1), (0, 0)))
        hs, ws = (h + 2) // 2, (w + 2) // 2
        s2d = ap.reshape(bsz, hs, 2, ws, 2, c).transpose(0, 1, 3, 2, 4, 5)
        s2d = s2d.reshape(bsz, hs, ws, 4 * c)
        cur, ssum, ssq = conv_layer(s2d, p['w'], p['b'], kh=2, kw=2,
                                    emit_stats=True, out_dtype=compute_dtype,
                                    max_band_rows=max_band_rows)
        h, w, c = h // 2, w // 2, cur.shape[-1]
        scale, shift = bn_scale_shift(ssum, ssq, bsz * h * w,
                                      p['gamma'], p['beta'])

    # ---- upsampling: polyphase ConvTranspose2d (2x2 taps -> 4*cout phases),
    #      previous BN+ReLU + bottom/right zero-pad fused into the band build.
    for i in range(n_downsampling):
        p = params[f'up{i}']
        a = jnp.maximum(cur.astype(f32) * scale + shift, 0.0).astype(compute_dtype)
        ap = jnp.pad(a, ((0, 0), (0, 1), (0, 1), (0, 0)))
        out4, ssum4, ssq4 = conv_layer(ap, p['w'], p['b'], kh=2, kw=2,
                                       emit_stats=True, out_dtype=compute_dtype,
                                       max_band_rows=max_band_rows)
        cout = out4.shape[-1] // 4
        y = out4.reshape(bsz, h, w, 2, 2, cout).transpose(0, 1, 3, 2, 4, 5)
        cur = y.reshape(bsz, 2 * h, 2 * w, cout)
        h, w, c = 2 * h, 2 * w, cout
        ssum = ssum4.reshape(4, cout).sum(axis=0)
        ssq = ssq4.reshape(4, cout).sum(axis=0)
        scale, shift = bn_scale_shift(ssum, ssq, bsz * h * w,
                                      p['gamma'], p['beta'])

    # ---- head: ReflectionPad2d(3) + Conv2d(k=7) + Tanh; output channels padded
    #      to 128 for lane-dense stores; previous BN+ReLU fused into band build.
    p = params['head']
    a = jnp.maximum(cur.astype(f32) * scale + shift, 0.0).astype(compute_dtype)
    ap = jnp.pad(a, ((0, 0), (3, 3), (3, 3), (0, 0)), mode='reflect')
    feat = conv_layer(ap, p['w'], p['b'], kh=7, kw=7, emit_stats=False,
                      out_act="tanh", out_dtype=jnp.float32,
                      max_band_rows=max_band_rows)          # (B, h, w, 128)
    cpad = feat.shape[-1]
    feat = feat.reshape(bsz, h * w, cpad)

    # ---- instance-wise average pooling (host np.unique mirrors the reference).
    inst_np = np.asarray(inst_nchw).astype(np.int64)
    ids = np.unique(inst_np).astype(np.int32)
    kpad = max(8, -(-ids.size // 8) * 8)
    ids_pad = np.full((kpad, 1), np.iinfo(np.int32).min, np.int32)
    ids_pad[:ids.size, 0] = ids
    inst_flat = jnp.asarray(inst_np.reshape(bsz, 1, h * w).astype(np.int32))
    pooled = instance_pool(feat, inst_flat, jnp.asarray(ids_pad))   # (B, HW, 128)

    pooled = pooled.reshape(bsz, h, w, cpad)[..., :output_nc]
    return jnp.transpose(pooled, (0, 3, 1, 2))


# ---------------------------------------------------------------------------

if __name__ == "__main__":
    key = jax.random.PRNGKey(0)
    k_x, k_inst, k_p = jax.random.split(key, 3)

    B, input_nc, output_nc, ngf, n_down, S = 2, 3, 3, 8, 2, 16
    x = jax.random.normal(k_x, (B, input_nc, S, S), jnp.float32)
    inst = jax.random.randint(k_inst, (B, 1, S, S), 0, 4).astype(jnp.int32)

    params = init_encoder_params(k_p, input_nc, output_nc, ngf, n_down)
    # max_band_rows=4 exercises the multi-band (halo) path even at this tiny size.
    out = encoder_forward(params, x, inst, n_down, output_nc, max_band_rows=4)
    out = jax.block_until_ready(out)

    assert out.shape == (B, output_nc, S, S), out.shape
    assert bool(jnp.all(jnp.isfinite(out)))
    assert bool(jnp.all(jnp.abs(out) <= 1.0 + 1e-3))   # means of tanh outputs
    print("KERNEL_OK")
</pallas_src>

<mosaic_0001>
module attributes {stable_mosaic.version = 11 : i64} {
  func.func @_tap_conv_kernel(%arg0: i32, %arg1: i32, %arg2: memref<1x4x16x147xbf16, #tpu.memory_space<vmem>>, %arg3: memref<1x147x8xbf16, #tpu.memory_space<vmem>>, %arg4: memref<1x8xf32, #tpu.memory_space<vmem>>, %arg5: memref<1x64x8xbf16, #tpu.memory_space<vmem>>, %arg6: memref<1x1x8xf32, #tpu.memory_space<vmem>>, %arg7: memref<1x1x8xf32, #tpu.memory_space<vmem>>) attributes {dimension_semantics = [#tpu.dimension_semantics<parallel>, #tpu.dimension_semantics<parallel>], iteration_bounds = array<i64: 8, 1>, scalar_prefetch = 0 : i64, scratch_operands = 0 : i64, tpu.core_type = #tpu.core_type<tc>, window_params = [{transform_indices = @transform_0, window_bounds = array<i64: 1, 4, 16, 147>}, {transform_indices = @transform_1, window_bounds = array<i64: 1, 147, 8>}, {transform_indices = @transform_2, window_bounds = array<i64: 1, 8>}, {transform_indices = @transform_3, window_bounds = array<i64: 1, 64, 8>}, {transform_indices = @transform_4, window_bounds = array<i64: 1, 1, 8>}, {transform_indices = @transform_5, window_bounds = array<i64: 1, 1, 8>}]} {
    %c0 = arith.constant 0 : index
    %c0_0 = arith.constant 0 : index
    %c0_1 = arith.constant 0 : index
    %c0_2 = arith.constant 0 : index
    %0 = vector.load %arg2[%c0, %c0_0, %c0_1, %c0_2] : memref<1x4x16x147xbf16, #tpu.memory_space<vmem>>, vector<1x4x16x147xbf16>
    %1 = vector.shape_cast %0 : vector<1x4x16x147xbf16> to vector<4x16x147xbf16>
    %cst = arith.constant 0.000000e+00 : f32
    %2 = vector.broadcast %cst : f32 to vector<64x8xf32>
    %3 = vector.shape_cast %1 : vector<4x16x147xbf16> to vector<64x147xbf16>
    %c0_3 = arith.constant 0 : index
    %c0_4 = arith.constant 0 : index
    %c0_5 = arith.constant 0 : index
    %4 = vector.load %arg3[%c0_3, %c0_4, %c0_5] : memref<1x147x8xbf16, #tpu.memory_space<vmem>>, vector<1x147x8xbf16>
    %5 = vector.shape_cast %4 : vector<1x147x8xbf16> to vector<147x8xbf16>
    %cst_6 = arith.constant dense<0.000000e+00> : vector<64x8xf32>
    %6 = tpu.matmul %3, %5, %cst_6 {dimension_numbers = #tpu.dot_dimension_numbers<[1], [0], [0], [1], [0, 0, 1, 1], [], []>} : vector<64x147xbf16>, vector<147x8xbf16>, vector<64x8xf32> -> vector<64x8xf32>
    %7 = arith.addf %2, %6 : vector<64x8xf32>
    %c0_7 = arith.constant 0 : index
    %c0_8 = arith.constant 0 : index
    %8 = vector.load %arg4[%c0_7, %c0_8] : memref<1x8xf32, #tpu.memory_space<vmem>>, vector<1x8xf32>
    %9 = vector.broadcast %8 : vector<1x8xf32> to vector<64x8xf32>
    %10 = arith.addf %7, %9 : vector<64x8xf32>
    %cst_9 = arith.constant dense<0.000000e+00> : vector<8xf32>
    %11 = vector.multi_reduction <add>, %10, %cst_9 [0] : vector<64x8xf32> to vector<8xf32>
    %12 = vector.shape_cast %11 : vector<8xf32> to vector<1x8xf32>
    %c0_10 = arith.constant 0 : index
    %c0_11 = arith.constant 0 : index
    %c0_12 = arith.constant 0 : index
    %13 = vector.load %arg6[%c0_10, %c0_11, %c0_12] : memref<1x1x8xf32, #tpu.memory_space<vmem>>, vector<1x1x8xf32>
    %14 = vector.shape_cast %13 : vector<1x1x8xf32> to vector<1x8xf32>
    %15 = vector.shape_cast %12 : vector<1x8xf32> to vector<1x1x8xf32>
    tpu.vector_store %arg6[%c0_10, %c0_11, %c0_12], %15 {strides = array<i32>} : memref<1x1x8xf32, #tpu.memory_space<vmem>>, vector<1x1x8xf32>,
    %16 = arith.mulf %10, %10 : vector<64x8xf32>
    %cst_13 = arith.constant dense<0.000000e+00> : vector<8xf32>
    %17 = vector.multi_reduction <add>, %16, %cst_13 [0] : vector<64x8xf32> to vector<8xf32>
    %18 = vector.shape_cast %17 : vector<8xf32> to vector<1x8xf32>
    %c0_14 = arith.constant 0 : index
    %c0_15 = arith.constant 0 : index
    %c0_16 = arith.constant 0 : index
    %19 = vector.load %arg7[%c0_14, %c0_15, %c0_16] : memref<1x1x8xf32, #tpu.memory_space<vmem>>, vector<1x1x8xf32>
    %20 = vector.shape_cast %19 : vector<1x1x8xf32> to vector<1x8xf32>
    %21 = vector.shape_cast %18 : vector<1x8xf32> to vector<1x1x8xf32>
    tpu.vector_store %arg7[%c0_14, %c0_15, %c0_16], %21 {strides = array<i32>} : memref<1x1x8xf32, #tpu.memory_space<vmem>>, vector<1x1x8xf32>,
    %22 = arith.truncf %10 : vector<64x8xf32> to vector<64x8xbf16>
    %c0_17 = arith.constant 0 : index
    %c0_18 = arith.constant 0 : index
    %c0_19 = arith.constant 0 : index
    %23 = vector.load %arg5[%c0_17, %c0_18, %c0_19] : memref<1x64x8xbf16, #tpu.memory_space<vmem>>, vector<1x64x8xbf16>
    %24 = vector.shape_cast %23 : vector<1x64x8xbf16> to vector<64x8xbf16>
    %25 = vector.shape_cast %22 : vector<64x8xbf16> to vector<1x64x8xbf16>
    tpu.vector_store %arg5[%c0_17, %c0_18, %c0_19], %25 {strides = array<i32>} : memref<1x64x8xbf16, #tpu.memory_space<vmem>>, vector<1x64x8xbf16>,
    return
  }
  func.func @transform_0(%arg0: i32, %arg1: i32) -> (i32, i32, i32, i32) {
    %c0_i32 = arith.constant 0 : i32
    %c0_i32_0 = arith.constant 0 : i32
    %c0_i32_1 = arith.constant 0 : i32
    %c0_i32_2 = arith.constant 0 : i32
    return %arg0, %c0_i32, %c0_i32_0, %c0_i32_1 : i32, i32, i32, i32
  }
  func.func @transform_1(%arg0: i32, %arg1: i32) -> (i32, i32, i32) {
    %c0_i32 = arith.constant 0 : i32
    %c0_i32_0 = arith.constant 0 : i32
    %c0_i32_1 = arith.constant 0 : i32
    return %c0_i32, %c0_i32_0, %arg1 : i32, i32, i32
  }
  func.func @transform_2(%arg0: i32, %arg1: i32) -> (i32, i32) {
    %c0_i32 = arith.constant 0 : i32
    %c0_i32_0 = arith.constant 0 : i32
    return %c0_i32, %arg1 : i32, i32
  }
  func.func @transform_3(%arg0: i32, %arg1: i32) -> (i32, i32, i32) {
    %c0_i32 = arith.constant 0 : i32
    %c0_i32_0 = arith.constant 0 : i32
    return %arg0, %c0_i32, %arg1 : i32, i32, i32
  }
  func.func @transform_4(%arg0: i32, %arg1: i32) -> (i32, i32, i32) {
    %c0_i32 = arith.constant 0 : i32
    %c0_i32_0 = arith.constant 0 : i32
    return %arg0, %c0_i32, %arg1 : i32, i32, i32
  }
  func.func @transform_5(%arg0: i32, %arg1: i32) -> (i32, i32, i32) {
    %c0_i32 = arith.constant 0 : i32
    %c0_i32_0 = arith.constant 0 : i32
    return %arg0, %c0_i32, %arg1 : i32, i32, i32
  }
}

</mosaic_0001>

<llo_original>
// kernel: tpu_custom_call.1
$region0: #{tpu_custom_call.1}
  #allocation0 [shape = 'u32[]', space=smem, size = 0x4, offset = 0x4, fixed_abs, tag = 'smem constant byte address 0x4 - core index']
  #allocation1 [shape = 'u32[144,128]{1,0:T(1,128)}', space=vmem, size = 0x12000, scoped, tag = 'internal scratch']
  %s0 = inlined_call_operand.hbm [shape: bf16[8,4,16,147], index: 0, kind: input, shape index: {}]
  %s1 = inlined_call_operand.vmem [shape: bf16[1,147,8], index: 1, kind: input, shape index: {}]
  %s2 = inlined_call_operand.vmem [shape: f32[1,8], index: 2, kind: input, shape index: {}]
  %s3 = inlined_call_operand.vmem [shape: bf16[8,64,8], index: 3, kind: output, shape index: {0}]
  %s4 = inlined_call_operand.hbm [shape: f32[8,1,8], index: 4, kind: output, shape index: {1}]
  %s5 = inlined_call_operand.hbm [shape: f32[8,1,8], index: 5, kind: output, shape index: {2}]
  %6 = xla_tuple %s3, %s4, %s5
  %s7 = sld [smem:[#allocation0]]
  $region65: #{tpu_custom_call.1} parent=0
    _
  %s9 = ssub.s32 1, %s7
  %s10 = scalar_select 0, %s9, %s7
  $region1: #{tpu_custom_call.1} parent=0
    #allocation2 [shape = 'u8[65536]{0}', space=vmem, size = 0x10000, scoped, tag = 'input window, operand 0']
    #allocation3 [shape = 's32[2]{0}', space=sflag, size = 0x8, scoped, tag = 'scoped memory for tpu_custom_call.1']
    #allocation4 [shape = 's32[2]{0}', space=sflag, size = 0x8, scoped, tag = 'scoped memory for tpu_custom_call.1']
    #allocation5 [shape = 'u8[1024]{0}', space=vmem, size = 0x400, scoped, tag = 'output window, operand 1']
    #allocation6 [shape = 'u8[1024]{0}', space=vmem, size = 0x400, scoped, tag = 'output window, operand 2']
    #allocation7 [shape = 's32[2]{0}', space=sflag, size = 0x8, scoped, tag = 'scoped memory for tpu_custom_call.1']
    %11 = vsyncpa [#allocation3], 0
    %s12 = scalar_lea.sflag [#allocation3], 1
    %13 = vsyncpa %s12, 0
    %14 = vsyncpa [#allocation4], 0
    %s15 = scalar_lea.sflag [#allocation4], 1
    %16 = vsyncpa %s15, 0
    %17 = vsyncpa [#allocation7], 0
    %s18 = scalar_lea.sflag [#allocation7], 1
    %19 = vsyncpa %s18, 0
    loop: start=0, step=1, limit=10
    $region2: #{tpu_custom_call.1} parent=1 // loop_pre_header
      _
    $region3: #{tpu_custom_call.1} parent=1 // loop_header
      %s21 = sphi 0, %s25
      %p22 = scmp.ge.s32.totalorder %s21, 10
      %s28 = sphi 0, %s40
      %s29 = sphi 0, %s36
      %s30 = sphi 0, %s28
      %s31 = sphi 0, %s29
      %s32 = sphi 0, %s30
      %s33 = sphi 0, %s31
      %s43 = sphi 0, %s45
      %s46 = sphi 0, %s43
      %s47 = sphi 0, %s46
      %s63 = sphi 0, %s47
      %s69 = sphi 0, %s71
      %s72 = sphi 0, %s69
      %s73 = sphi 0, %s72
      %s89 = sphi 0, %s73
      %s95 = sphi 0, %s97
      %s98 = sphi 0, %s95
      %s99 = sphi 0, %s98
      %s115 = sphi 0, %s99
      %s123 = sphi 0, %s125
      %s126 = sphi 0, %s123
      %s127 = sphi 0, %s126
      %s143 = sphi 0, %s127
      %s151 = sphi 0, %s153
      %s154 = sphi 0, %s151
      %s155 = sphi 0, %s154
      %s171 = sphi 0, %s155
      %s179 = sphi 0, %s181
      %s182 = sphi 0, %s179
      %s183 = sphi 0, %s182
      %s199 = sphi 0, %s183
    $region4: #{tpu_custom_call.1} parent=1 // loop_header_branch
      %24 = sbr.rel (%p22) target = $region8
    $region5: #{tpu_custom_call.1} parent=1 // loop_body
      %s26 = ssub.s32 %s21, 1
      %s27 = ssub.s32 %s21, 2
      %s34 = sadd.s32 1, %s29
      %p35 = scmp.ge.s32.totalorder %s34, 1
      %s36 = scalar_select %p35, 0, %s34
      %s37 = sadd.s32 1, %s28
      %s38 = scalar_select %p35, %s37, %s28
      %p39 = scmp.ge.s32.totalorder %s38, 8
      %s40 = scalar_select %p39, 0, %s38
      %s41 = ssub.s32 %s28, %s40
      %p42 = scmp.eq.s32.totalorder %s41, 0
      %s44 = sadd.s32 %s43, 1
      %s45 = scalar_select %p42, %s43, %s44
      %p48 = pneg %p42
      %p49 = scmp.eq.s32.totalorder %s21, 7
      %p50 = por %p48, %p49
      %p51 = scmp.ne.s32.totalorder %s43, %s46
      %p52 = scmp.eq.s32.totalorder %s21, 0
      %p53 = por %p51, %p52
      %p54 = scmp.ne.s32.totalorder %s43, %s46
      %p55 = scmp.eq.s32.totalorder %s26, 7
      %p56 = por %p54, %p55
      %p57 = scmp.ne.s32.totalorder %s46, %s47
      %p58 = scmp.eq.s32.totalorder %s26, 0
      %p59 = por %p57, %p58
      %p60 = scmp.ne.s32.totalorder %s46, %s47
      %p61 = scmp.eq.s32.totalorder %s27, 7
      %p62 = por %p60, %p61
      %p64 = scmp.ne.s32.totalorder %s47, %s63
      %p65 = scmp.eq.s32.totalorder %s27, 0
      %p66 = por %p64, %p65
      %s67 = ssub.s32 %s29, %s36
      %p68 = scmp.eq.s32.totalorder %s67, 0
      %s70 = sadd.s32 %s69, 1
      %s71 = scalar_select %p68, %s69, %s70
      %p74 = pneg %p68
      %p75 = scmp.eq.s32.totalorder %s21, 7
      %p76 = por %p74, %p75
      %p77 = scmp.ne.s32.totalorder %s69, %s72
      %p78 = scmp.eq.s32.totalorder %s21, 0
      %p79 = por %p77, %p78
      %p80 = scmp.ne.s32.totalorder %s69, %s72
      %p81 = scmp.eq.s32.totalorder %s26, 7
      %p82 = por %p80, %p81
      %p83 = scmp.ne.s32.totalorder %s72, %s73
      %p84 = scmp.eq.s32.totalorder %s26, 0
      %p85 = por %p83, %p84
      %p86 = scmp.ne.s32.totalorder %s72, %s73
      %p87 = scmp.eq.s32.totalorder %s27, 7
      %p88 = por %p86, %p87
      %p90 = scmp.ne.s32.totalorder %s73, %s89
      %p91 = scmp.eq.s32.totalorder %s27, 0
      %p92 = por %p90, %p91
      %s93 = ssub.s32 %s29, %s36
      %p94 = scmp.eq.s32.totalorder %s93, 0
      %s96 = sadd.s32 %s95, 1
      %s97 = scalar_select %p94, %s95, %s96
      %p100 = pneg %p94
      %p101 = scmp.eq.s32.totalorder %s21, 7
      %p102 = por %p100, %p101
      %p103 = scmp.ne.s32.totalorder %s95, %s98
      %p104 = scmp.eq.s32.totalorder %s21, 0
      %p105 = por %p103, %p104
      %p106 = scmp.ne.s32.totalorder %s95, %s98
      %p107 = scmp.eq.s32.totalorder %s26, 7
      %p108 = por %p106, %p107
      %p109 = scmp.ne.s32.totalorder %s98, %s99
      %p110 = scmp.eq.s32.totalorder %s26, 0
      %p111 = por %p109, %p110
      %p112 = scmp.ne.s32.totalorder %s98, %s99
      %p113 = scmp.eq.s32.totalorder %s27, 7
      %p114 = por %p112, %p113
      %p116 = scmp.ne.s32.totalorder %s99, %s115
      %p117 = scmp.eq.s32.totalorder %s27, 0
      %p118 = por %p116, %p117
      %s119 = ssub.s32 %s28, %s40
      %s120 = ssub.s32 %s29, %s36
      %s121 = sor.u32 %s119, %s120
      %p122 = scmp.eq.s32.totalorder %s121, 0
      %s124 = sadd.s32 %s123, 1
      %s125 = scalar_select %p122, %s123, %s124
      %p128 = pneg %p122
      %p129 = scmp.eq.s32.totalorder %s21, 7
      %p130 = por %p128, %p129
      %p131 = scmp.ne.s32.totalorder %s123, %s126
      %p132 = scmp.eq.s32.totalorder %s21, 0
      %p133 = por %p131, %p132
      %p134 = scmp.ne.s32.totalorder %s123, %s126
      %p135 = scmp.eq.s32.totalorder %s26, 7
      %p136 = por %p134, %p135
      %p137 = scmp.ne.s32.totalorder %s126, %s127
      %p138 = scmp.eq.s32.totalorder %s26, 0
      %p139 = por %p137, %p138
      %p140 = scmp.ne.s32.totalorder %s126, %s127
      %p141 = scmp.eq.s32.totalorder %s27, 7
      %p142 = por %p140, %p141
      %p144 = scmp.ne.s32.totalorder %s127, %s143
      %p145 = scmp.eq.s32.totalorder %s27, 0
      %p146 = por %p144, %p145
      %s147 = ssub.s32 %s28, %s40
      %s148 = ssub.s32 %s29, %s36
      %s149 = sor.u32 %s147, %s148
      %p150 = scmp.eq.s32.totalorder %s149, 0
      %s152 = sadd.s32 %s151, 1
      %s153 = scalar_select %p150, %s151, %s152
      %p156 = pneg %p150
      %p157 = scmp.eq.s32.totalorder %s21, 7
      %p158 = por %p156, %p157
      %p159 = scmp.ne.s32.totalorder %s151, %s154
      %p160 = scmp.eq.s32.totalorder %s21, 0
      %p161 = por %p159, %p160
      %p162 = scmp.ne.s32.totalorder %s151, %s154
      %p163 = scmp.eq.s32.totalorder %s26, 7
      %p164 = por %p162, %p163
      %p165 = scmp.ne.s32.totalorder %s154, %s155
      %p166 = scmp.eq.s32.totalorder %s26, 0
      %p167 = por %p165, %p166
      %p168 = scmp.ne.s32.totalorder %s154, %s155
      %p169 = scmp.eq.s32.totalorder %s27, 7
      %p170 = por %p168, %p169
      %p172 = scmp.ne.s32.totalorder %s155, %s171
      %p173 = scmp.eq.s32.totalorder %s27, 0
      %p174 = por %p172, %p173
      %s175 = ssub.s32 %s28, %s40
      %s176 = ssub.s32 %s29, %s36
      %s177 = sor.u32 %s175, %s176
      %p178 = scmp.eq.s32.totalorder %s177, 0
      %s180 = sadd.s32 %s179, 1
      %s181 = scalar_select %p178, %s179, %s180
      %p184 = pneg %p178
      %p185 = scmp.eq.s32.totalorder %s21, 7
      %p186 = por %p184, %p185
      %p187 = scmp.ne.s32.totalorder %s179, %s182
      %p188 = scmp.eq.s32.totalorder %s21, 0
      %p189 = por %p187, %p188
      %p190 = scmp.ne.s32.totalorder %s179, %s182
      %p191 = scmp.eq.s32.totalorder %s26, 7
      %p192 = por %p190, %p191
      %p193 = scmp.ne.s32.totalorder %s182, %s183
      %p194 = scmp.eq.s32.totalorder %s26, 0
      %p195 = por %p193, %p194
      %p196 = scmp.ne.s32.totalorder %s182, %s183
      %p197 = scmp.eq.s32.totalorder %s27, 7
      %p198 = por %p196, %p197
      %p200 = scmp.ne.s32.totalorder %s183, %s199
      %p201 = scmp.eq.s32.totalorder %s27, 0
      %p202 = por %p200, %p201
      %p203 = scmp.le.s32.totalorder 1, %s21
      %p204 = scmp.lt.s32.totalorder %s21, 9
      %p205 = pnand %p203, %p204
      %p206 = pneg %p205
      // Predicated region
      $region9: #{tpu_custom_call.1} parent=5 // pred_check
        _
      $region10: #{tpu_custom_call.1} parent=5 // pred_check_branch
        %208 = sbr.rel (%p205) target = $region12
      $region11: #{tpu_custom_call.1} parent=5 // pred_region
        %s209 = ssub.s32 %s21, 1
        // Predicated region
        $region13: #{tpu_custom_call.1} parent=11 // pred_check
          %p210 = pneg %p85
        $region14: #{tpu_custom_call.1} parent=11 // pred_check_branch
          %212 = sbr.rel (%p210) target = $region16
        $region15: #{tpu_custom_call.1} parent=11 // pred_region
          %p213 = scmp.lt.s32.totalorder %s31, 0
          %s214 = scalar_select %p213, %s31, 0
          %s215 = smul.addr %s214, 4
          %s216 = scalar_lea.vmem %s1, %s215
        $region16: #{tpu_custom_call.1} parent=11 // pred_fallthru
          _
        // Predicated region
        $region17: #{tpu_custom_call.1} parent=11 // pred_check
          %p217 = pneg %p111
        $region18: #{tpu_custom_call.1} parent=11 // pred_check_branch
          %219 = sbr.rel (%p217) target = $region20
        $region19: #{tpu_custom_call.1} parent=11 // pred_region
          %p220 = scmp.lt.s32.totalorder %s31, 0
          %s221 = scalar_select %p220, %s31, 0
          %s222 = scalar_lea.vmem %s2, %s221
        $region20: #{tpu_custom_call.1} parent=11 // pred_fallthru
          _
      $region12: #{tpu_custom_call.1} parent=5 // pred_fallthru
        _
      %p223 = scmp.lt.s32.totalorder %s21, 8
      // Predicated region
      $region21: #{tpu_custom_call.1} parent=5 // pred_check
        %p224 = pneg %p223
      $region22: #{tpu_custom_call.1} parent=5 // pred_check_branch
        %226 = sbr.rel (%p224) target = $region24
      $region23: #{tpu_custom_call.1} parent=5 // pred_region
        // Predicated region
        $region25: #{tpu_custom_call.1} parent=23 // pred_check
          %p227 = pneg %p53
        $region26: #{tpu_custom_call.1} parent=23 // pred_check_branch
          %229 = sbr.rel (%p227) target = $region28
        $region27: #{tpu_custom_call.1} parent=23 // pred_region
          %s230 = sand.u32 %s43, 1
          %s231 = scalar_lea.sflag [#allocation3], %s230
          %s232 = sand.u32 %s43, 1
          %s233 = smul.addr %s232, 64
          %s234 = scalar_lea.vmem [#allocation2], %s233
          %s236 = ssub.s32 1024, 1024
          %237 = vsyncadd %s231, %s236
          %s238 = smul.addr %s28, 16
          %s239 = smul.addr %s238, 64
          %s240 = scalar_lea.hbm %s0, %s239
          %s241 = sshll.u32 %s234, 4
          %s242 = int_to_ptr.vmem [resolvable:$true] %s241
          %247 = dma.hbm_to_vmem [thread:$0]  %s240, 1024, %s242, %s231, 128, 128, 8
        $region28: #{tpu_custom_call.1} parent=23 // pred_fallthru
          _
      $region24: #{tpu_custom_call.1} parent=5 // pred_fallthru
        _
      %p248 = scmp.le.s32.totalorder 1, %s21
      %p249 = scmp.lt.s32.totalorder %s21, 9
      %p250 = pnand %p248, %p249
      %p251 = pneg %p250
      // Predicated region
      $region29: #{tpu_custom_call.1} parent=5 // pred_check
        _
      $region30: #{tpu_custom_call.1} parent=5 // pred_check_branch
        %253 = sbr.rel (%p250) target = $region32
      $region31: #{tpu_custom_call.1} parent=5 // pred_region
        %s254 = ssub.s32 %s21, 1
        %s255 = sand.u32 %s46, 1
        %s256 = scalar_lea.sflag [#allocation3], %s255
        %s257 = sand.u32 %s46, 1
        %s258 = smul.addr %s257, 64
        %s259 = scalar_lea.vmem [#allocation2], %s258
        // Predicated region
        $region33: #{tpu_custom_call.1} parent=31 // pred_check
          %p260 = pneg %p59
        $region34: #{tpu_custom_call.1} parent=31 // pred_check_branch
          %262 = sbr.rel (%p260) target = $region36
        $region35: #{tpu_custom_call.1} parent=31 // pred_region
          %263 = dma.done %s256, 1024
        $region36: #{tpu_custom_call.1} parent=31 // pred_fallthru
          _
        %s264 = sand.u32 %s46, 1
        %s265 = scalar_lea.sflag [#allocation3], %s264
        %s266 = sand.u32 %s46, 1
        %s267 = smul.addr %s266, 64
        %s268 = scalar_lea.vmem [#allocation2], %s267
        %p269 = pneg %p59
        %p270 = pneg %p56
        %p271 = scmp.lt.s32.totalorder %s31, 0
        %s272 = scalar_select %p271, %s31, 0
        %s273 = smul.addr %s272, 4
        %s274 = scalar_lea.vmem %s1, %s273
        %p275 = pneg %p85
        %p276 = pneg %p82
        %p277 = scmp.lt.s32.totalorder %s31, 0
        %s278 = scalar_select %p277, %s31, 0
        %s279 = scalar_lea.vmem %s2, %s278
        %p280 = pneg %p111
        %p281 = pneg %p108
        %p282 = pneg %p139
        %p283 = pneg %p136
        %p284 = scmp.lt.s32.totalorder %s30, 7
        %s285 = scalar_select %p284, %s30, 7
        %p286 = scmp.lt.s32.totalorder %s31, 0
        %s287 = scalar_select %p286, %s31, 0
        %s288 = smul.addr %s285, 8
        %s289 = sadd.s32 %s287, %s288
        %s290 = smul.addr %s289, 4
        %s291 = scalar_lea.vmem %s3, %s290
        %p292 = pneg %p167
        %p293 = pneg %p164
        %s294 = sand.u32 %s154, 1
        %s295 = scalar_lea.sflag [#allocation4], %s294
        %s296 = sand.u32 %s154, 1
        %s297 = scalar_lea.vmem [#allocation5], %s296
        %p298 = pneg %p195
        %p299 = pneg %p192
        %s300 = sand.u32 %s182, 1
        %s301 = scalar_lea.sflag [#allocation7], %s300
        %s302 = sand.u32 %s182, 1
        %s303 = scalar_lea.vmem [#allocation6], %s302
        %p304 = scmp.lt.s32.totalorder %s31, 0
        %s305 = scalar_select %p304, %s31, 0
        %s306 = smul.addr %s305, 4
        %s307 = scalar_lea.vmem %s1, %s306
        %p308 = scmp.lt.s32.totalorder %s31, 0
        %s309 = scalar_select %p308, %s31, 0
        %s310 = scalar_lea.vmem %s2, %s309
        %p311 = scmp.lt.s32.totalorder %s30, 7
        %s312 = scalar_select %p311, %s30, 7
        %p313 = scmp.lt.s32.totalorder %s31, 0
        %s314 = scalar_select %p313, %s31, 0
        %s315 = smul.addr %s312, 8
        %s316 = sadd.s32 %s314, %s315
        %s317 = smul.addr %s316, 4
        %s318 = scalar_lea.vmem %s3, %s317
        %v320 = vld [vmem:[%s259] sm:$0xff]
        %v321 = vld [vmem:[%s259 + $0x8] sm:$0xff]
        %v322 = vld [vmem:[%s259 + $0x10] sm:$0xff]
        %v323 = vld [vmem:[%s259 + $0x18] sm:$0xff]
        %v324 = vld [vmem:[%s259 + $0x20] sm:$0xff]
        %v325 = vld [vmem:[%s259 + $0x28] sm:$0xff]
        %v326 = vld [vmem:[%s259 + $0x30] sm:$0xff]
        %v327 = vld [vmem:[%s259 + $0x38] sm:$0xff]
        %v328 = vld [vmem:[%s307] sm:$0xf]
        %v329 = vld [vmem:[%s307 + $0x4] sm:$0xf]
        %v330 = vld [vmem:[%s307 + $0x8] sm:$0xf]
        %v331 = vld [vmem:[%s307 + $0xc] sm:$0xf]
        %v332 = vld [vmem:[%s307 + $0x10] sm:$0xf]
        %v333 = vld [vmem:[%s307 + $0x14] sm:$0xf]
        %v334 = vld [vmem:[%s307 + $0x18] sm:$0xf]
        %v335 = vld [vmem:[%s307 + $0x1c] sm:$0xf]
        %v336 = vld [vmem:[%s307 + $0x20] sm:$0xf]
        %v337 = vld [vmem:[%s307 + $0x24] sm:$0xf]
        %v338 = vld [vmem:[%s307 + $0x28] sm:$0xf]
        %v339 = vld [vmem:[%s307 + $0x2c] sm:$0xf]
        %v340 = vld [vmem:[%s307 + $0x30] sm:$0xf]
        %v341 = vld [vmem:[%s307 + $0x34] sm:$0xf]
        %v342 = vld [vmem:[%s307 + $0x38] sm:$0xf]
        %v343 = vld [vmem:[%s307 + $0x3c] sm:$0xf]
        %v344 = vld [vmem:[%s307 + $0x40] sm:$0xf]
        %v345 = vld [vmem:[%s307 + $0x44] sm:$0xf]
        %v346 = vld [vmem:[%s307 + $0x48] sm:$0x3]
        %v347 = vld [vmem:[%s310] sm:$0x1]
        %v349 = vlaneseq
        %v350 = vshrl.u32 %v349, 7
        %v351 = vsub.s32 0, %v350
        %v352 = vrot.slane %v347, %v351
        %v362 = vunpack.c.l.b16 %v320
        %v363 = vunpack.c.h.b16 %v320
        %v364 = vunpack.c.l.b16 %v321
        %v365 = vunpack.c.h.b16 %v321
        %v366 = vunpack.c.l.b16 %v322
        %v367 = vunpack.c.h.b16 %v322
        %v368 = vunpack.c.l.b16 %v323
        %v369 = vunpack.c.h.b16 %v323
        %v370 = vunpack.c.l.b16 %v324
        %v371 = vunpack.c.h.b16 %v324
        %v372 = vunpack.c.l.b16 %v325
        %v373 = vunpack.c.h.b16 %v325
        %v374 = vunpack.c.l.b16 %v326
        %v375 = vunpack.c.h.b16 %v326
        %v376 = vunpack.c.l.b16 %v327
        %v377 = vunpack.c.h.b16 %v327
        %v378 = vpack.c.b16 %v364, %v362
        %v379 = vpack.c.b16 %v365, %v363
        %v380 = vpack.c.b16 %v368, %v366
        %v381 = vpack.c.b16 %v369, %v367
        %v382 = vpack.c.b16 %v372, %v370
        %v383 = vpack.c.b16 %v373, %v371
        %v384 = vpack.c.b16 %v376, %v374
        %v385 = vpack.c.b16 %v377, %v375
        %v409 = vunpack.c.l.b16 %v328
        %v410 = vunpack.c.l.b16 %v329
        %v411 = vunpack.c.l.b16 %v330
        %v412 = vunpack.c.l.b16 %v331
        %v413 = vunpack.c.l.b16 %v332
        %v414 = vunpack.c.l.b16 %v333
        %v415 = vunpack.c.l.b16 %v334
        %v416 = vunpack.c.l.b16 %v335
        %v417 = vunpack.c.l.b16 %v336
        %v418 = vunpack.c.l.b16 %v337
        %v419 = vunpack.c.l.b16 %v338
        %v420 = vunpack.c.l.b16 %v339
        %v421 = vunpack.c.l.b16 %v340
        %v422 = vunpack.c.l.b16 %v341
        %v423 = vunpack.c.l.b16 %v342
        %v424 = vunpack.c.l.b16 %v343
        %v425 = vunpack.c.l.b16 %v344
        %v426 = vunpack.c.l.b16 %v345
        %v427 = vunpack.c.l.b16 %v346
        %v428 = vpack.c.b16 %v410, %v409
        %v429 = vpack.c.b16 %v412, %v411
        %v430 = vpack.c.b16 %v414, %v413
        %v431 = vpack.c.b16 %v416, %v415
        %v432 = vpack.c.b16 %v418, %v417
        %v433 = vpack.c.b16 %v420, %v419
        %v434 = vpack.c.b16 %v422, %v421
        %v435 = vpack.c.b16 %v424, %v423
        %v436 = vpack.c.b16 %v426, %v425
        %v437 = vpack.c.b16 %v427, %v427
        %vm447 = vcmask 154624
        %v449 = vsel %vm447, %v379, 0
        %v452 = vsel %vm447, %v381, 0
        %v455 = vsel %vm447, %v383, 0
        %v458 = vsel %vm447, %v385, 0
        %vm460 = vcmask 1040384
        %vm461 = vcmask 1041408
        %v462 = vsel %vm460, 4294967295, 65535
        %v463 = vsel %vm461, %v462, 0
        %v465 = vand.u32 %v437, %v463
        %467 = vmatprep.subr.bf16.mxu0 0
        %468 = vmatpush1.bf16.msra.mxu0 %v428
        %469 = vmatprep.subr.bf16.mxu0 0
        %470 = vmatpush1.bf16.msra.mxu0 %v429
        %471 = vmatprep.subr.bf16.mxu0 0
        %472 = vmatpush1.bf16.msra.mxu0 %v430
        %473 = vmatprep.subr.bf16.mxu0 0
        %474 = vmatpush1.bf16.msra.mxu0 %v431
        %475 = vmatprep.subr.bf16.mxu0 0
        %476 = vmatpush1.bf16.msra.mxu0 %v432
        %477 = vmatprep.subr.bf16.mxu0 0
        %478 = vmatpush1.bf16.msra.mxu0 %v433
        %479 = vmatprep.subr.bf16.mxu0 0
        %480 = vmatpush1.bf16.msra.mxu0 %v434
        %481 = vmatprep.subr.bf16.mxu0 0
        %482 = vmatpush1.bf16.msra.mxu0 %v435
        %483 = vmatprep.subr.bf16.mxu0 0
        %484 = vmatpush1.bf16.msra.mxu0 %v436
        %485 = vmatprep.subr.bf16.mxu0 0
        %486 = vmatpush1.bf16.msra.mxu0 %v465
        %487 = vmatprep.subr.bf16.mxu0 0
        %488 = vmatpush1.bf16.msra.mxu0 0
        %489 = vmatprep.subr.bf16.mxu0 0
        %490 = vmatpush1.bf16.msra.mxu0 0
        %491 = vmatprep.subr.bf16.mxu0 0
        %492 = vmatpush1.bf16.msra.mxu0 0
        %493 = vmatprep.subr.bf16.mxu0 0
        %494 = vmatpush1.bf16.msra.mxu0 0
        %495 = vmatprep.subr.bf16.mxu0 0
        %496 = vmatpush1.bf16.msra.mxu0 0
        %497 = vmatprep.subr.bf16.mxu0 0
        %498 = vmatpush1.bf16.msra.mxu0 0
        %499 = vmatprep.mubr.bf16.mxu0 %v449
        %500 = vmatmul.mubr.bf16.gmra.mrb[0].mxu0 %v378
        %v501 = vpop.f32.mrb[0].mxu0
        %v502 = vadd.f32 %v352, %v501
        %v503 = vpop.f32.mrb[0].mxu0
        %v504 = vpop.f32.mrb[0].mxu0
        %v505 = vadd.f32 %v352, %v504
        %v506 = vpop.f32.mrb[0].mxu0
        %507 = vmatprep.mubr.bf16.mxu0 %v452
        %508 = vmatmul.mubr.bf16.gmra.mrb[0].mxu0 %v380
        %v509 = vpop.f32.mrb[0].mxu0
        %v510 = vadd.f32 %v352, %v509
        %v511 = vpop.f32.mrb[0].mxu0
        %v512 = vpop.f32.mrb[0].mxu0
        %v513 = vadd.f32 %v352, %v512
        %v514 = vpop.f32.mrb[0].mxu0
        %515 = vmatprep.mubr.bf16.mxu0 %v455
        %516 = vmatmul.mubr.bf16.gmra.mrb[0].mxu0 %v382
        %v517 = vpop.f32.mrb[0].mxu0
        %v518 = vadd.f32 %v352, %v517
        %v519 = vpop.f32.mrb[0].mxu0
        %v520 = vpop.f32.mrb[0].mxu0
        %v521 = vadd.f32 %v352, %v520
        %v522 = vpop.f32.mrb[0].mxu0
        %523 = vmatprep.mubr.bf16.mxu0 %v458
        %524 = vmatmul.mubr.bf16.gmra.mrb[0].mxu0 %v384
        %v525 = vpop.f32.mrb[0].mxu0
        %v526 = vadd.f32 %v352, %v525
        %v527 = vpop.f32.mrb[0].mxu0
        %v528 = vpop.f32.mrb[0].mxu0
        %v529 = vadd.f32 %v352, %v528
        %v530 = vpop.f32.mrb[0].mxu0
        %531 = vdwg.mxu0
        %vm532 = vcmask 64512
        %v533 = vsel %vm532, %v502, 0.0
        %v534 = vsel %vm532, %v505, 0.0
        %v535 = vadd.f32 %v533, %v534
        %v536 = vsel %vm532, %v510, 0.0
        %v537 = vadd.f32 %v535, %v536
        %v538 = vsel %vm532, %v513, 0.0
        %v539 = vadd.f32 %v537, %v538
        %v540 = vsel %vm532, %v518, 0.0
        %v541 = vadd.f32 %v539, %v540
        %v542 = vsel %vm532, %v521, 0.0
        %v543 = vadd.f32 %v541, %v542
        %v544 = vsel %vm532, %v526, 0.0
        %v545 = vadd.f32 %v543, %v544
        %v546 = vsel %vm532, %v529, 0.0
        %v547 = vadd.f32 %v545, %v546
        %v548 = vrot.slane %v547, 4
        %v549 = vadd.f32 %v547, %v548
        %v550 = vrot.slane %v549, 2
        %v551 = vadd.f32 %v549, %v550
        %v552 = vrot.slane %v551, 1
        %v553 = vadd.f32 %v551, %v552
        %vm554 = vcmask 57344
        %555 = vst.msk [vmem:[%s297] sm:$0x1] %vm554, %v553
        %v556 = vmul.f32 %v502, %v502
        %v557 = vmul.f32 %v505, %v505
        %v558 = vmul.f32 %v510, %v510
        %v559 = vmul.f32 %v513, %v513
        %v560 = vmul.f32 %v518, %v518
        %v561 = vmul.f32 %v521, %v521
        %v562 = vmul.f32 %v526, %v526
        %v563 = vmul.f32 %v529, %v529
        %v564 = vsel %vm532, %v556, 0.0
        %v565 = vsel %vm532, %v557, 0.0
        %v566 = vadd.f32 %v564, %v565
        %v567 = vsel %vm532, %v558, 0.0
        %v568 = vadd.f32 %v566, %v567
        %v569 = vsel %vm532, %v559, 0.0
        %v570 = vadd.f32 %v568, %v569
        %v571 = vsel %vm532, %v560, 0.0
        %v572 = vadd.f32 %v570, %v571
        %v573 = vsel %vm532, %v561, 0.0
        %v574 = vadd.f32 %v572, %v573
        %v575 = vsel %vm532, %v562, 0.0
        %v576 = vadd.f32 %v574, %v575
        %v577 = vsel %vm532, %v563, 0.0
        %v578 = vadd.f32 %v576, %v577
        %v579 = vrot.slane %v578, 4
        %v580 = vadd.f32 %v578, %v579
        %v581 = vrot.slane %v580, 2
        %v582 = vadd.f32 %v580, %v581
        %v583 = vrot.slane %v582, 1
        %v584 = vadd.f32 %v582, %v583
        %585 = vst.msk [vmem:[%s303] sm:$0x1] %vm554, %v584
        %v586 = vpack.c.bf16 %v505, %v502
        %v587 = vpack.c.bf16 %v513, %v510
        %v588 = vpack.c.bf16 %v521, %v518
        %v589 = vpack.c.bf16 %v529, %v526
        %v594 = vunpack.c.l.b16 %v586
        %v595 = vunpack.c.h.b16 %v586
        %v596 = vunpack.c.l.b16 %v587
        %v597 = vunpack.c.h.b16 %v587
        %v598 = vunpack.c.l.b16 %v588
        %v599 = vunpack.c.h.b16 %v588
        %v600 = vunpack.c.l.b16 %v589
        %v601 = vunpack.c.h.b16 %v589
        %v602 = vpack.c.b16 %v594, %v594
        %v603 = vpack.c.b16 %v595, %v595
        %v604 = vpack.c.b16 %v596, %v596
        %v605 = vpack.c.b16 %v597, %v597
        %v606 = vpack.c.b16 %v598, %v598
        %v607 = vpack.c.b16 %v599, %v599
        %v608 = vpack.c.b16 %v600, %v600
        %v609 = vpack.c.b16 %v601, %v601
        %vm618 = vcmask 60416
        %619 = vst.msk [vmem:[%s318] sm:$0xf] %vm618, %v602
        %620 = vst.msk [vmem:[%s318 + $0x4] sm:$0xf] %vm618, %v603
        %621 = vst.msk [vmem:[%s318 + $0x8] sm:$0xf] %vm618, %v604
        %622 = vst.msk [vmem:[%s318 + $0xc] sm:$0xf] %vm618, %v605
        %623 = vst.msk [vmem:[%s318 + $0x10] sm:$0xf] %vm618, %v606
        %624 = vst.msk [vmem:[%s318 + $0x14] sm:$0xf] %vm618, %v607
        %625 = vst.msk [vmem:[%s318 + $0x18] sm:$0xf] %vm618, %v608
        %626 = vst.msk [vmem:[%s318 + $0x1c] sm:$0xf] %vm618, %v609
        %p627 = scmp.lt.s32.totalorder %s30, 7
        %s628 = scalar_select %p627, %s30, 7
        %p629 = scmp.lt.s32.totalorder %s31, 0
        %s630 = scalar_select %p629, %s31, 0
        %s631 = smul.addr %s628, 8
        %s632 = sadd.s32 %s630, %s631
        %s633 = smul.addr %s632, 4
        %s634 = scalar_lea.vmem %s3, %s633
        %s635 = sand.u32 %s154, 1
        %s636 = scalar_lea.sflag [#allocation4], %s635
        %s637 = sand.u32 %s154, 1
        %s638 = scalar_lea.vmem [#allocation5], %s637
        %s639 = sand.u32 %s182, 1
        %s640 = scalar_lea.sflag [#allocation7], %s639
        %s641 = sand.u32 %s182, 1
        %s642 = scalar_lea.vmem [#allocation6], %s641
        // Predicated region
        $region37: #{tpu_custom_call.1} parent=31 // pred_check
          %p643 = pneg %p136
        $region38: #{tpu_custom_call.1} parent=31 // pred_check_branch
          %645 = sbr.rel (%p643) target = $region40
        $region39: #{tpu_custom_call.1} parent=31 // pred_region
          _
        $region40: #{tpu_custom_call.1} parent=31 // pred_fallthru
          _
        // Predicated region
        $region41: #{tpu_custom_call.1} parent=31 // pred_check
          %p646 = pneg %p164
        $region42: #{tpu_custom_call.1} parent=31 // pred_check_branch
          %648 = sbr.rel (%p646) target = $region44
        $region43: #{tpu_custom_call.1} parent=31 // pred_region
          %s650 = ssub.s32 16, 16
          %651 = vsyncadd %s636, %s650
          %s652 = sadd.s32 %s31, %s30
          %s653 = smul.addr %s652, 16
          %s654 = scalar_lea.hbm %s4, %s653
          %s656 = sshll.u32 %s638, 4
          %s657 = int_to_ptr.vmem [resolvable:$true] %s656
          %659 = dma.vmem_to_hbm [thread:$0]  %s657, 16, %s654, %s636
        $region44: #{tpu_custom_call.1} parent=31 // pred_fallthru
          _
        // Predicated region
        $region45: #{tpu_custom_call.1} parent=31 // pred_check
          %p660 = pneg %p192
        $region46: #{tpu_custom_call.1} parent=31 // pred_check_branch
          %662 = sbr.rel (%p660) target = $region48
        $region47: #{tpu_custom_call.1} parent=31 // pred_region
          %s664 = ssub.s32 16, 16
          %665 = vsyncadd %s640, %s664
          %s666 = sadd.s32 %s31, %s30
          %s667 = smul.addr %s666, 16
          %s668 = scalar_lea.hbm %s5, %s667
          %s670 = sshll.u32 %s642, 4
          %s671 = int_to_ptr.vmem [resolvable:$true] %s670
          %673 = dma.vmem_to_hbm [thread:$0]  %s671, 16, %s668, %s640
        $region48: #{tpu_custom_call.1} parent=31 // pred_fallthru
          _
      $region32: #{tpu_custom_call.1} parent=5 // pred_fallthru
        _
      %p674 = scmp.le.s32.totalorder 2, %s21
      // Predicated region
      $region49: #{tpu_custom_call.1} parent=5 // pred_check
        %p675 = pneg %p674
      $region50: #{tpu_custom_call.1} parent=5 // pred_check_branch
        %677 = sbr.rel (%p675) target = $region52
      $region51: #{tpu_custom_call.1} parent=5 // pred_region
        %s678 = ssub.s32 %s21, 2
        // Predicated region
        $region53: #{tpu_custom_call.1} parent=51 // pred_check
          %p679 = pneg %p142
        $region54: #{tpu_custom_call.1} parent=51 // pred_check_branch
          %681 = sbr.rel (%p679) target = $region56
        $region55: #{tpu_custom_call.1} parent=51 // pred_region
          %p682 = scmp.lt.s32.totalorder %s32, 7
          %s683 = scalar_select %p682, %s32, 7
          %p684 = scmp.lt.s32.totalorder %s33, 0
          %s685 = scalar_select %p684, %s33, 0
          %s686 = smul.addr %s683, 8
          %s687 = sadd.s32 %s685, %s686
          %s688 = smul.addr %s687, 4
          %s689 = scalar_lea.vmem %s3, %s688
        $region56: #{tpu_custom_call.1} parent=51 // pred_fallthru
          _
        // Predicated region
        $region57: #{tpu_custom_call.1} parent=51 // pred_check
          %p690 = pneg %p170
        $region58: #{tpu_custom_call.1} parent=51 // pred_check_branch
          %692 = sbr.rel (%p690) target = $region60
        $region59: #{tpu_custom_call.1} parent=51 // pred_region
          %s693 = sand.u32 %s155, 1
          %s694 = scalar_lea.sflag [#allocation4], %s693
          %s695 = sand.u32 %s155, 1
          %s696 = scalar_lea.vmem [#allocation5], %s695
          %697 = dma.done %s694, 16
        $region60: #{tpu_custom_call.1} parent=51 // pred_fallthru
          _
        // Predicated region
        $region61: #{tpu_custom_call.1} parent=51 // pred_check
          %p698 = pneg %p198
        $region62: #{tpu_custom_call.1} parent=51 // pred_check_branch
          %700 = sbr.rel (%p698) target = $region64
        $region63: #{tpu_custom_call.1} parent=51 // pred_region
          %s701 = sand.u32 %s183, 1
          %s702 = scalar_lea.sflag [#allocation7], %s701
          %s703 = sand.u32 %s183, 1
          %s704 = scalar_lea.vmem [#allocation6], %s703
          %705 = dma.done %s702, 16
        $region64: #{tpu_custom_call.1} parent=51 // pred_fallthru
          _
      $region52: #{tpu_custom_call.1} parent=5 // pred_fallthru
        _
    $region6: #{tpu_custom_call.1} parent=1 // loop_footer
      %s25 = sadd.s32 1, %s21
    $region7: #{tpu_custom_call.1} parent=1 // loop_footer_branch
      %20 = sbr.rel target = $region3
    $region8: #{tpu_custom_call.1} parent=1 // loop_exit
      _
    %706 = vsyncpa [#allocation3], 1
    %s707 = scalar_lea.sflag [#allocation3], 1
    %708 = vsyncpa %s707, 1
    %709 = vsyncpa [#allocation4], 1
    %s710 = scalar_lea.sflag [#allocation4], 1
    %711 = vsyncpa %s710, 1
    %712 = vsyncpa [#allocation7], 1
    %s713 = scalar_lea.sflag [#allocation7], 1
    %714 = vsyncpa %s713, 1

</llo_original>
